<compile_context>
chip_gen: v5e
topology: v5e:2x2
jax: 0.10.0
libtpu: 0.0.40
codegen_flags: <defaults>
</compile_context>

<pallas_src>
import math
from functools import partial

import jax
import jax.numpy as jnp
from jax import lax
from jax.experimental import pallas as pl
from jax.experimental.pallas import tpu as pltpu

# ---- module hyper-parameters (MLPRender_PE defaults) -------------------------
IN_CHANEL = 27          # appearance-feature channels fed to the render head
VIEWPE = 6
POSPE = 6
FEATURE_C = 128
TILE_N_TARGET = 4096    # rows (sample points) per grid step (sweep 2048-8192)

# Width of mlp_in as actually produced by forward():
#   features (inChanel) + viewdirs (3) + PE(pts) (2*pospe*3) + PE(view) (2*viewpe*3)
IN_MLP = IN_CHANEL + 3 + 2 * POSPE * 3 + 2 * VIEWPE * 3
# TODO(synk): the PyTorch module declares in_mlpC = 3 + 2*viewpe*3 + (3+2*pospe*3)
# + inChanel (=105), which over-counts the never-concatenated raw pts by 3; layer1
# is sized here to the width forward() actually produces (102) so it is runnable.
# Loading pretrained PyTorch weights would shape-mismatch on layer 1.


# ---- parameter init (deterministic, PyTorch nn.Linear-style uniform) ---------
def _linear(key, fan_in, fan_out, zero_bias=False):
    """PyTorch nn.Linear default init: U(-1/sqrt(fan_in), 1/sqrt(fan_in))."""
    kw, kb = jax.random.split(key)
    bound = 1.0 / math.sqrt(fan_in)
    w = jax.random.uniform(kw, (fan_out, fan_in), jnp.float32, -bound, bound)
    if zero_bias:
        b = jnp.zeros((fan_out,), jnp.float32)
    else:
        b = jax.random.uniform(kb, (fan_out,), jnp.float32, -bound, bound)
    return w, b


def init_params(key):
    k1, k2, k3 = jax.random.split(key, 3)
    w1, b1 = _linear(k1, IN_MLP, FEATURE_C)
    w2, b2 = _linear(k2, FEATURE_C, FEATURE_C)
    w3, b3 = _linear(k3, FEATURE_C, 3, zero_bias=True)   # constant_(mlp[-1].bias, 0)
    return (w1, b1, w2, b2, w3, b3)


def pack_params(params):
    """One-time prep of kernel-layout weights (hoisted out of the forward path)."""
    w1, b1, w2, b2, w3, b3 = params
    return dict(
        w1=w1.T.astype(jnp.bfloat16),                 # (IN_MLP, FEATURE_C)
        b1=b1.reshape(1, -1).astype(jnp.float32),     # (1, FEATURE_C)
        w2=w2.T.astype(jnp.bfloat16),                 # (FEATURE_C, FEATURE_C)
        b2=b2.reshape(1, -1).astype(jnp.float32),     # (1, FEATURE_C)
        w3=w3.astype(jnp.bfloat16),                   # (3, FEATURE_C)  UN-transposed
        b3=b3.reshape(-1, 1).astype(jnp.float32),     # (3, 1)
    )


# ---- positional encoding (mirrors the PyTorch helper exactly) -----------------
def positional_encoding(positions, freqs):
    freq_bands = 2.0 ** jnp.arange(freqs, dtype=jnp.float32)
    pts = (positions[..., None] * freq_bands).reshape(
        positions.shape[:-1] + (freqs * positions.shape[-1],))
    return jnp.concatenate([jnp.sin(pts), jnp.cos(pts)], axis=-1)


# ---- Pallas kernel ------------------------------------------------------------
def _mlp_render_kernel(x_ref, w1_ref, b1_ref, w2_ref, b2_ref, w3_ref, b3_ref, o_ref):
    # x_ref: (tile_n, IN_MLP) bf16; weights bf16; biases f32; o_ref: (3, tile_n) f32.
    x = x_ref[...]
    h = jnp.dot(x, w1_ref[...], preferred_element_type=jnp.float32) + b1_ref[...]
    h = jnp.maximum(h, 0.0).astype(jnp.bfloat16)          # one down-cast per layer
    h = jnp.dot(h, w2_ref[...], preferred_element_type=jnp.float32) + b2_ref[...]
    h = jnp.maximum(h, 0.0).astype(jnp.bfloat16)
    # Lane-dense layer 3: (3, C) x (tile_n, C) contracted on C -> (3, tile_n),
    # so the output stores are unmasked full-lane vst (rows on lanes).
    logits = lax.dot_general(
        w3_ref[...], h,
        dimension_numbers=(((1,), (1,)), ((), ())),
        preferred_element_type=jnp.float32) + b3_ref[...]
    # sigmoid: exp on EUP + approximate reciprocal on EUP (free slot in epilogue)
    o_ref[...] = pl.reciprocal(1.0 + jnp.exp(-logits), approx=True)


# ---- tile selection ------------------------------------------------------------
def _round_up(x, m):
    return ((x + m - 1) // m) * m


def _choose_tile(n, target=TILE_N_TARGET):
    # Keep >= 2 grid steps whenever N allows it (megacore sharding on v7x),
    # tile must be a multiple of 128 (it becomes the lane dim of the output block).
    half = _round_up(max((n + 1) // 2, 128), 128)
    return max(min(target, half), 128)


# ---- wrapper -------------------------------------------------------------------
@partial(jax.jit, static_argnames=("tile_n",))
def mlprender_pe_forward(pts, viewdirs, features, packed, *, tile_n=None):
    n = pts.shape[0]
    if tile_n is None:
        tile_n = _choose_tile(n)

    # XLA prologue: positional encoding + concat, then cast matmul input to bf16.
    pe_pts = positional_encoding(pts, POSPE)
    pe_view = positional_encoding(viewdirs, VIEWPE)
    mlp_in = jnp.concatenate([features, viewdirs, pe_pts, pe_view], axis=-1)
    assert mlp_in.shape[-1] == IN_MLP
    mlp_in = mlp_in.astype(jnp.bfloat16)

    w1k, b1k = packed["w1"], packed["b1"]
    w2k, b2k = packed["w2"], packed["b2"]
    w3k, b3k = packed["w3"], packed["b3"]

    # Pad ragged N up to a multiple of the tile.
    pad = (-n) % tile_n
    if pad:
        mlp_in = jnp.pad(mlp_in, ((0, pad), (0, 0)))
    n_padded = n + pad
    grid = (n_padded // tile_n,)

    def weight_spec(p):
        return pl.BlockSpec(p.shape, lambda i: (0, 0))

    out = pl.pallas_call(
        _mlp_render_kernel,
        out_shape=jax.ShapeDtypeStruct((3, n_padded), jnp.float32),
        grid_spec=pltpu.PrefetchScalarGridSpec(
            num_scalar_prefetch=0,
            grid=grid,
            in_specs=[
                pl.BlockSpec((tile_n, IN_MLP), lambda i: (i, 0)),
                weight_spec(w1k), weight_spec(b1k),
                weight_spec(w2k), weight_spec(b2k),
                weight_spec(w3k), weight_spec(b3k),
            ],
            out_specs=pl.BlockSpec((3, tile_n), lambda i: (0, i)),
        ),
        compiler_params=pltpu.CompilerParams(
            dimension_semantics=("parallel",),
            vmem_limit_bytes=48 * 1024 * 1024,   # v7x-safe (64 MiB VMEM/TC)
        ),
    )(mlp_in, w1k, b1k, w2k, b2k, w3k, b3k)

    # channels-first (3, n_padded) -> (n, 3)
    return out[:, :n].T


# ---- pure-JAX reference (mirrors the PyTorch forward exactly, all f32) ---------
def mlprender_pe_reference(pts, viewdirs, features, params):
    w1, b1, w2, b2, w3, b3 = params
    indata = [features, viewdirs,
              positional_encoding(pts, POSPE),
              positional_encoding(viewdirs, VIEWPE)]
    x = jnp.concatenate(indata, axis=-1)
    h = jnp.maximum(x @ w1.T + b1, 0.0)
    h = jnp.maximum(h @ w2.T + b2, 0.0)
    return jax.nn.sigmoid(h @ w3.T + b3)


if __name__ == "__main__":
    key = jax.random.PRNGKey(0)
    kp, kv, kf, kw = jax.random.split(key, 4)

    N = 1000                      # ragged on purpose (not a multiple of the tile)
    pts = jax.random.normal(kp, (N, 3), jnp.float32)
    viewdirs = jax.random.normal(kv, (N, 3), jnp.float32)
    viewdirs = viewdirs / jnp.linalg.norm(viewdirs, axis=-1, keepdims=True)
    features = jax.random.normal(kf, (N, IN_CHANEL), jnp.float32)
    params = init_params(kw)
    packed = pack_params(params)

    out = mlprender_pe_forward(pts, viewdirs, features, packed)
    out = jax.block_until_ready(out)

    ref = mlprender_pe_reference(pts, viewdirs, features, params)
    assert out.shape == (N, 3)
    # bf16 matmul inputs with f32 accumulation + approx reciprocal -> relaxed tolerance
    assert jnp.allclose(out, ref, atol=2e-2, rtol=2e-2), "mismatch vs reference"

    print("KERNEL_OK")
</pallas_src>

<mosaic_0001>
module attributes {stable_mosaic.version = 11 : i64} {
  func.func @_mlp_render_kernel(%arg0: i32, %arg1: memref<512x102xbf16, #tpu.memory_space<vmem>>, %arg2: memref<102x128xbf16, #tpu.memory_space<vmem>>, %arg3: memref<1x128xf32, #tpu.memory_space<vmem>>, %arg4: memref<128x128xbf16, #tpu.memory_space<vmem>>, %arg5: memref<1x128xf32, #tpu.memory_space<vmem>>, %arg6: memref<3x128xbf16, #tpu.memory_space<vmem>>, %arg7: memref<3x1xf32, #tpu.memory_space<vmem>>, %arg8: memref<3x512xf32, #tpu.memory_space<vmem>>) attributes {dimension_semantics = [#tpu.dimension_semantics<parallel>], iteration_bounds = array<i64: 2>, scalar_prefetch = 0 : i64, scratch_operands = 0 : i64, tpu.core_type = #tpu.core_type<tc>, window_params = [{transform_indices = @transform_0, window_bounds = array<i64: 512, 102>}, {pipeline_mode = #tpu.pipeline_mode<synchronous>, transform_indices = @transform_1, window_bounds = array<i64: 102, 128>}, {pipeline_mode = #tpu.pipeline_mode<synchronous>, transform_indices = @transform_2, window_bounds = array<i64: 1, 128>}, {pipeline_mode = #tpu.pipeline_mode<synchronous>, transform_indices = @transform_3, window_bounds = array<i64: 128, 128>}, {pipeline_mode = #tpu.pipeline_mode<synchronous>, transform_indices = @transform_4, window_bounds = array<i64: 1, 128>}, {pipeline_mode = #tpu.pipeline_mode<synchronous>, transform_indices = @transform_5, window_bounds = array<i64: 3, 128>}, {pipeline_mode = #tpu.pipeline_mode<synchronous>, transform_indices = @transform_6, window_bounds = array<i64: 3, 1>}, {transform_indices = @transform_7, window_bounds = array<i64: 3, 512>}]} {
    %c0 = arith.constant 0 : index
    %c0_0 = arith.constant 0 : index
    %0 = vector.load %arg1[%c0, %c0_0] : memref<512x102xbf16, #tpu.memory_space<vmem>>, vector<512x102xbf16>
    %c0_1 = arith.constant 0 : index
    %c0_2 = arith.constant 0 : index
    %1 = vector.load %arg2[%c0_1, %c0_2] : memref<102x128xbf16, #tpu.memory_space<vmem>>, vector<102x128xbf16>
    %cst = arith.constant dense<0.000000e+00> : vector<512x128xf32>
    %2 = tpu.matmul %0, %1, %cst {dimension_numbers = #tpu.dot_dimension_numbers<[1], [0], [0], [1], [0, 0, 1, 1], [], []>} : vector<512x102xbf16>, vector<102x128xbf16>, vector<512x128xf32> -> vector<512x128xf32>
    %c0_3 = arith.constant 0 : index
    %c0_4 = arith.constant 0 : index
    %3 = vector.load %arg3[%c0_3, %c0_4] : memref<1x128xf32, #tpu.memory_space<vmem>>, vector<1x128xf32>
    %4 = vector.broadcast %3 : vector<1x128xf32> to vector<512x128xf32>
    %5 = arith.addf %2, %4 : vector<512x128xf32>
    %cst_5 = arith.constant 0.000000e+00 : f32
    %6 = vector.broadcast %cst_5 : f32 to vector<512x128xf32>
    %7 = arith.maximumf %5, %6 : vector<512x128xf32>
    %8 = arith.truncf %7 : vector<512x128xf32> to vector<512x128xbf16>
    %c0_6 = arith.constant 0 : index
    %c0_7 = arith.constant 0 : index
    %9 = vector.load %arg4[%c0_6, %c0_7] : memref<128x128xbf16, #tpu.memory_space<vmem>>, vector<128x128xbf16>
    %cst_8 = arith.constant dense<0.000000e+00> : vector<512x128xf32>
    %10 = tpu.matmul %8, %9, %cst_8 {dimension_numbers = #tpu.dot_dimension_numbers<[1], [0], [0], [1], [0, 0, 1, 1], [], []>} : vector<512x128xbf16>, vector<128x128xbf16>, vector<512x128xf32> -> vector<512x128xf32>
    %c0_9 = arith.constant 0 : index
    %c0_10 = arith.constant 0 : index
    %11 = vector.load %arg5[%c0_9, %c0_10] : memref<1x128xf32, #tpu.memory_space<vmem>>, vector<1x128xf32>
    %12 = vector.broadcast %11 : vector<1x128xf32> to vector<512x128xf32>
    %13 = arith.addf %10, %12 : vector<512x128xf32>
    %cst_11 = arith.constant 0.000000e+00 : f32
    %14 = vector.broadcast %cst_11 : f32 to vector<512x128xf32>
    %15 = arith.maximumf %13, %14 : vector<512x128xf32>
    %16 = arith.truncf %15 : vector<512x128xf32> to vector<512x128xbf16>
    %c0_12 = arith.constant 0 : index
    %c0_13 = arith.constant 0 : index
    %17 = vector.load %arg6[%c0_12, %c0_13] : memref<3x128xbf16, #tpu.memory_space<vmem>>, vector<3x128xbf16>
    %cst_14 = arith.constant dense<0.000000e+00> : vector<3x512xf32>
    %18 = tpu.matmul %17, %16, %cst_14 {dimension_numbers = #tpu.dot_dimension_numbers<[1], [1], [0], [0], [0, 0, 1, 0], [], []>} : vector<3x128xbf16>, vector<512x128xbf16>, vector<3x512xf32> -> vector<3x512xf32>
    %c0_15 = arith.constant 0 : index
    %c0_16 = arith.constant 0 : index
    %19 = vector.load %arg7[%c0_15, %c0_16] : memref<3x1xf32, #tpu.memory_space<vmem>>, vector<3x1xf32>
    %20 = vector.broadcast %19 : vector<3x1xf32> to vector<3x512xf32>
    %21 = arith.addf %18, %20 : vector<3x512xf32>
    %cst_17 = arith.constant 0.000000e+00 : f32
    %22 = vector.broadcast %cst_17 : f32 to vector<3x512xf32>
    %23 = arith.subf %22, %21 : vector<3x512xf32>
    %24 = math.exp %23 : vector<3x512xf32>
    %cst_18 = arith.constant 1.000000e+00 : f32
    %25 = vector.broadcast %cst_18 : f32 to vector<3x512xf32>
    %26 = arith.addf %25, %24 : vector<3x512xf32>
    %27 = tpu.reciprocal %26 {approx = true} : vector<3x512xf32> -> vector<3x512xf32>
    %c0_19 = arith.constant 0 : index
    %c0_20 = arith.constant 0 : index
    %28 = vector.load %arg8[%c0_19, %c0_20] : memref<3x512xf32, #tpu.memory_space<vmem>>, vector<3x512xf32>
    tpu.vector_store %arg8[%c0_19, %c0_20], %27 {strides = array<i32>} : memref<3x512xf32, #tpu.memory_space<vmem>>, vector<3x512xf32>,
    return
  }
  func.func @transform_0(%arg0: i32) -> (i32, i32) {
    %c0_i32 = arith.constant 0 : i32
    %c0_i32_0 = arith.constant 0 : i32
    return %arg0, %c0_i32 : i32, i32
  }
  func.func @transform_1(%arg0: i32) -> (i32, i32) {
    %c0_i32 = arith.constant 0 : i32
    %c0_i32_0 = arith.constant 0 : i32
    %c0_i32_1 = arith.constant 0 : i32
    return %c0_i32, %c0_i32_0 : i32, i32
  }
  func.func @transform_2(%arg0: i32) -> (i32, i32) {
    %c0_i32 = arith.constant 0 : i32
    %c0_i32_0 = arith.constant 0 : i32
    %c0_i32_1 = arith.constant 0 : i32
    return %c0_i32, %c0_i32_0 : i32, i32
  }
  func.func @transform_3(%arg0: i32) -> (i32, i32) {
    %c0_i32 = arith.constant 0 : i32
    %c0_i32_0 = arith.constant 0 : i32
    %c0_i32_1 = arith.constant 0 : i32
    return %c0_i32, %c0_i32_0 : i32, i32
  }
  func.func @transform_4(%arg0: i32) -> (i32, i32) {
    %c0_i32 = arith.constant 0 : i32
    %c0_i32_0 = arith.constant 0 : i32
    %c0_i32_1 = arith.constant 0 : i32
    return %c0_i32, %c0_i32_0 : i32, i32
  }
  func.func @transform_5(%arg0: i32) -> (i32, i32) {
    %c0_i32 = arith.constant 0 : i32
    %c0_i32_0 = arith.constant 0 : i32
    %c0_i32_1 = arith.constant 0 : i32
    return %c0_i32, %c0_i32_0 : i32, i32
  }
  func.func @transform_6(%arg0: i32) -> (i32, i32) {
    %c0_i32 = arith.constant 0 : i32
    %c0_i32_0 = arith.constant 0 : i32
    %c0_i32_1 = arith.constant 0 : i32
    return %c0_i32, %c0_i32_0 : i32, i32
  }
  func.func @transform_7(%arg0: i32) -> (i32, i32) {
    %c0_i32 = arith.constant 0 : i32
    %c0_i32_0 = arith.constant 0 : i32
    return %c0_i32, %arg0 : i32, i32
  }
}

</mosaic_0001>

<llo_original>
// kernel: mlprender_pe_forward.1
$region0: #{mlprender_pe_forward.1}
  #allocation0 [shape = 'u32[]', space=smem, size = 0x4, offset = 0x4, fixed_abs, tag = 'smem constant byte address 0x4 - core index']
  #allocation1 [shape = 'u32[72,128]{1,0:T(1,128)}', space=vmem, size = 0x9000, scoped, tag = 'internal scratch']
  %s0 = inlined_call_operand.vmem [shape: bf16[1024,102], index: 0, kind: input, shape index: {}]
  %s1 = inlined_call_operand.vmem [shape: bf16[102,128], index: 1, kind: input, shape index: {}]
  %s2 = inlined_call_operand.vmem [shape: f32[1,128], index: 2, kind: input, shape index: {}]
  %s3 = inlined_call_operand.vmem [shape: bf16[128,128], index: 3, kind: input, shape index: {}]
  %s4 = inlined_call_operand.vmem [shape: f32[1,128], index: 4, kind: input, shape index: {}]
  %s5 = inlined_call_operand.vmem [shape: bf16[3,128], index: 5, kind: input, shape index: {}]
  %s6 = inlined_call_operand.vmem [shape: f32[3,1], index: 6, kind: input, shape index: {}]
  %s7 = inlined_call_operand.vmem [shape: f32[3,1024], index: 7, kind: output, shape index: {}]
  %s8 = sld [smem:[#allocation0]]
  $region61: #{mlprender_pe_forward.1} parent=0
    _
  %s10 = ssub.s32 1, %s8
  %s11 = scalar_select 0, %s10, %s8
  loop: start=0, step=1, limit=4
  $region2: #{mlprender_pe_forward.1} parent=0 // loop_pre_header
    _
  $region3: #{mlprender_pe_forward.1} parent=0 // loop_header
    %s13 = sphi 0, %s17
    %p14 = scmp.ge.s32.totalorder %s13, 4
    %s23 = sphi 0, %s25
    %s26 = sphi 0, %s23
    %s27 = sphi 0, %s26
    %s43 = sphi 0, %s27
    %s47 = sphi 0, %s47
    %s49 = sphi 0, %s47
    %s50 = sphi 0, %s49
    %s64 = sphi 0, %s50
    %s68 = sphi 0, %s68
    %s70 = sphi 0, %s68
    %s71 = sphi 0, %s70
    %s85 = sphi 0, %s71
    %s89 = sphi 0, %s89
    %s91 = sphi 0, %s89
    %s92 = sphi 0, %s91
    %s106 = sphi 0, %s92
    %s110 = sphi 0, %s110
    %s112 = sphi 0, %s110
    %s113 = sphi 0, %s112
    %s127 = sphi 0, %s113
    %s131 = sphi 0, %s131
    %s133 = sphi 0, %s131
    %s134 = sphi 0, %s133
    %s148 = sphi 0, %s134
    %s152 = sphi 0, %s152
    %s154 = sphi 0, %s152
    %s155 = sphi 0, %s154
    %s169 = sphi 0, %s155
    %s175 = sphi 0, %s177
    %s178 = sphi 0, %s175
    %s179 = sphi 0, %s178
    %s195 = sphi 0, %s179
  $region4: #{mlprender_pe_forward.1} parent=0 // loop_header_branch
    %16 = sbr.rel (%p14) target = $region8
  $region5: #{mlprender_pe_forward.1} parent=0 // loop_body
    %s18 = ssub.s32 %s13, 1
    %s19 = ssub.s32 %s13, 2
    %s20 = sadd.s32 %s13, 1
    %s21 = ssub.s32 %s13, %s20
    %p22 = scmp.eq.s32.totalorder %s21, 0
    %s24 = sadd.s32 %s23, 1
    %s25 = scalar_select %p22, %s23, %s24
    %p28 = pneg %p22
    %p29 = scmp.eq.s32.totalorder %s13, 1
    %p30 = por %p28, %p29
    %p31 = scmp.ne.s32.totalorder %s23, %s26
    %p32 = scmp.eq.s32.totalorder %s13, 0
    %p33 = por %p31, %p32
    %p34 = scmp.ne.s32.totalorder %s23, %s26
    %p35 = scmp.eq.s32.totalorder %s18, 1
    %p36 = por %p34, %p35
    %p37 = scmp.ne.s32.totalorder %s26, %s27
    %p38 = scmp.eq.s32.totalorder %s18, 0
    %p39 = por %p37, %p38
    %p40 = scmp.ne.s32.totalorder %s26, %s27
    %p41 = scmp.eq.s32.totalorder %s19, 1
    %p42 = por %p40, %p41
    %p44 = scmp.ne.s32.totalorder %s27, %s43
    %p45 = scmp.eq.s32.totalorder %s19, 0
    %p46 = por %p44, %p45
    %s48 = sadd.s32 %s47, 1
    %p51 = scmp.eq.s32.totalorder %s13, 1
    %p52 = scmp.ne.s32.totalorder %s47, %s49
    %p53 = scmp.eq.s32.totalorder %s13, 0
    %p54 = por %p52, %p53
    %p55 = scmp.ne.s32.totalorder %s47, %s49
    %p56 = scmp.eq.s32.totalorder %s18, 1
    %p57 = por %p55, %p56
    %p58 = scmp.ne.s32.totalorder %s49, %s50
    %p59 = scmp.eq.s32.totalorder %s18, 0
    %p60 = por %p58, %p59
    %p61 = scmp.ne.s32.totalorder %s49, %s50
    %p62 = scmp.eq.s32.totalorder %s19, 1
    %p63 = por %p61, %p62
    %p65 = scmp.ne.s32.totalorder %s50, %s64
    %p66 = scmp.eq.s32.totalorder %s19, 0
    %p67 = por %p65, %p66
    %s69 = sadd.s32 %s68, 1
    %p72 = scmp.eq.s32.totalorder %s13, 1
    %p73 = scmp.ne.s32.totalorder %s68, %s70
    %p74 = scmp.eq.s32.totalorder %s13, 0
    %p75 = por %p73, %p74
    %p76 = scmp.ne.s32.totalorder %s68, %s70
    %p77 = scmp.eq.s32.totalorder %s18, 1
    %p78 = por %p76, %p77
    %p79 = scmp.ne.s32.totalorder %s70, %s71
    %p80 = scmp.eq.s32.totalorder %s18, 0
    %p81 = por %p79, %p80
    %p82 = scmp.ne.s32.totalorder %s70, %s71
    %p83 = scmp.eq.s32.totalorder %s19, 1
    %p84 = por %p82, %p83
    %p86 = scmp.ne.s32.totalorder %s71, %s85
    %p87 = scmp.eq.s32.totalorder %s19, 0
    %p88 = por %p86, %p87
    %s90 = sadd.s32 %s89, 1
    %p93 = scmp.eq.s32.totalorder %s13, 1
    %p94 = scmp.ne.s32.totalorder %s89, %s91
    %p95 = scmp.eq.s32.totalorder %s13, 0
    %p96 = por %p94, %p95
    %p97 = scmp.ne.s32.totalorder %s89, %s91
    %p98 = scmp.eq.s32.totalorder %s18, 1
    %p99 = por %p97, %p98
    %p100 = scmp.ne.s32.totalorder %s91, %s92
    %p101 = scmp.eq.s32.totalorder %s18, 0
    %p102 = por %p100, %p101
    %p103 = scmp.ne.s32.totalorder %s91, %s92
    %p104 = scmp.eq.s32.totalorder %s19, 1
    %p105 = por %p103, %p104
    %p107 = scmp.ne.s32.totalorder %s92, %s106
    %p108 = scmp.eq.s32.totalorder %s19, 0
    %p109 = por %p107, %p108
    %s111 = sadd.s32 %s110, 1
    %p114 = scmp.eq.s32.totalorder %s13, 1
    %p115 = scmp.ne.s32.totalorder %s110, %s112
    %p116 = scmp.eq.s32.totalorder %s13, 0
    %p117 = por %p115, %p116
    %p118 = scmp.ne.s32.totalorder %s110, %s112
    %p119 = scmp.eq.s32.totalorder %s18, 1
    %p120 = por %p118, %p119
    %p121 = scmp.ne.s32.totalorder %s112, %s113
    %p122 = scmp.eq.s32.totalorder %s18, 0
    %p123 = por %p121, %p122
    %p124 = scmp.ne.s32.totalorder %s112, %s113
    %p125 = scmp.eq.s32.totalorder %s19, 1
    %p126 = por %p124, %p125
    %p128 = scmp.ne.s32.totalorder %s113, %s127
    %p129 = scmp.eq.s32.totalorder %s19, 0
    %p130 = por %p128, %p129
    %s132 = sadd.s32 %s131, 1
    %p135 = scmp.eq.s32.totalorder %s13, 1
    %p136 = scmp.ne.s32.totalorder %s131, %s133
    %p137 = scmp.eq.s32.totalorder %s13, 0
    %p138 = por %p136, %p137
    %p139 = scmp.ne.s32.totalorder %s131, %s133
    %p140 = scmp.eq.s32.totalorder %s18, 1
    %p141 = por %p139, %p140
    %p142 = scmp.ne.s32.totalorder %s133, %s134
    %p143 = scmp.eq.s32.totalorder %s18, 0
    %p144 = por %p142, %p143
    %p145 = scmp.ne.s32.totalorder %s133, %s134
    %p146 = scmp.eq.s32.totalorder %s19, 1
    %p147 = por %p145, %p146
    %p149 = scmp.ne.s32.totalorder %s134, %s148
    %p150 = scmp.eq.s32.totalorder %s19, 0
    %p151 = por %p149, %p150
    %s153 = sadd.s32 %s152, 1
    %p156 = scmp.eq.s32.totalorder %s13, 1
    %p157 = scmp.ne.s32.totalorder %s152, %s154
    %p158 = scmp.eq.s32.totalorder %s13, 0
    %p159 = por %p157, %p158
    %p160 = scmp.ne.s32.totalorder %s152, %s154
    %p161 = scmp.eq.s32.totalorder %s18, 1
    %p162 = por %p160, %p161
    %p163 = scmp.ne.s32.totalorder %s154, %s155
    %p164 = scmp.eq.s32.totalorder %s18, 0
    %p165 = por %p163, %p164
    %p166 = scmp.ne.s32.totalorder %s154, %s155
    %p167 = scmp.eq.s32.totalorder %s19, 1
    %p168 = por %p166, %p167
    %p170 = scmp.ne.s32.totalorder %s155, %s169
    %p171 = scmp.eq.s32.totalorder %s19, 0
    %p172 = por %p170, %p171
    %s173 = ssub.s32 %s13, %s20
    %p174 = scmp.eq.s32.totalorder %s173, 0
    %s176 = sadd.s32 %s175, 1
    %s177 = scalar_select %p174, %s175, %s176
    %p180 = pneg %p174
    %p181 = scmp.eq.s32.totalorder %s13, 1
    %p182 = por %p180, %p181
    %p183 = scmp.ne.s32.totalorder %s175, %s178
    %p184 = scmp.eq.s32.totalorder %s13, 0
    %p185 = por %p183, %p184
    %p186 = scmp.ne.s32.totalorder %s175, %s178
    %p187 = scmp.eq.s32.totalorder %s18, 1
    %p188 = por %p186, %p187
    %p189 = scmp.ne.s32.totalorder %s178, %s179
    %p190 = scmp.eq.s32.totalorder %s18, 0
    %p191 = por %p189, %p190
    %p192 = scmp.ne.s32.totalorder %s178, %s179
    %p193 = scmp.eq.s32.totalorder %s19, 1
    %p194 = por %p192, %p193
    %p196 = scmp.ne.s32.totalorder %s179, %s195
    %p197 = scmp.eq.s32.totalorder %s19, 0
    %p198 = por %p196, %p197
    %p199 = scmp.le.s32.totalorder 1, %s13
    %p200 = scmp.lt.s32.totalorder %s13, 3
    %p201 = pnand %p199, %p200
    %p202 = pneg %p201
    // Predicated region
    $region9: #{mlprender_pe_forward.1} parent=5 // pred_check
      _
    $region10: #{mlprender_pe_forward.1} parent=5 // pred_check_branch
      %204 = sbr.rel (%p201) target = $region12
    $region11: #{mlprender_pe_forward.1} parent=5 // pred_region
      %s205 = ssub.s32 %s13, 1
      // Predicated region
      $region13: #{mlprender_pe_forward.1} parent=11 // pred_check
        %p206 = pneg %p60
      $region14: #{mlprender_pe_forward.1} parent=11 // pred_check_branch
        %208 = sbr.rel (%p206) target = $region16
      $region15: #{mlprender_pe_forward.1} parent=11 // pred_region
        _
      $region16: #{mlprender_pe_forward.1} parent=11 // pred_fallthru
        _
      // Predicated region
      $region17: #{mlprender_pe_forward.1} parent=11 // pred_check
        %p209 = pneg %p81
      $region18: #{mlprender_pe_forward.1} parent=11 // pred_check_branch
        %211 = sbr.rel (%p209) target = $region20
      $region19: #{mlprender_pe_forward.1} parent=11 // pred_region
        _
      $region20: #{mlprender_pe_forward.1} parent=11 // pred_fallthru
        _
      // Predicated region
      $region21: #{mlprender_pe_forward.1} parent=11 // pred_check
        %p212 = pneg %p102
      $region22: #{mlprender_pe_forward.1} parent=11 // pred_check_branch
        %214 = sbr.rel (%p212) target = $region24
      $region23: #{mlprender_pe_forward.1} parent=11 // pred_region
        _
      $region24: #{mlprender_pe_forward.1} parent=11 // pred_fallthru
        _
      // Predicated region
      $region25: #{mlprender_pe_forward.1} parent=11 // pred_check
        %p215 = pneg %p123
      $region26: #{mlprender_pe_forward.1} parent=11 // pred_check_branch
        %217 = sbr.rel (%p215) target = $region28
      $region27: #{mlprender_pe_forward.1} parent=11 // pred_region
        _
      $region28: #{mlprender_pe_forward.1} parent=11 // pred_fallthru
        _
      // Predicated region
      $region29: #{mlprender_pe_forward.1} parent=11 // pred_check
        %p218 = pneg %p144
      $region30: #{mlprender_pe_forward.1} parent=11 // pred_check_branch
        %220 = sbr.rel (%p218) target = $region32
      $region31: #{mlprender_pe_forward.1} parent=11 // pred_region
        _
      $region32: #{mlprender_pe_forward.1} parent=11 // pred_fallthru
        _
      // Predicated region
      $region33: #{mlprender_pe_forward.1} parent=11 // pred_check
        %p221 = pneg %p165
      $region34: #{mlprender_pe_forward.1} parent=11 // pred_check_branch
        %223 = sbr.rel (%p221) target = $region36
      $region35: #{mlprender_pe_forward.1} parent=11 // pred_region
        _
      $region36: #{mlprender_pe_forward.1} parent=11 // pred_fallthru
        _
    $region12: #{mlprender_pe_forward.1} parent=5 // pred_fallthru
      _
    %p224 = scmp.lt.s32.totalorder %s13, 2
    // Predicated region
    $region37: #{mlprender_pe_forward.1} parent=5 // pred_check
      %p225 = pneg %p224
    $region38: #{mlprender_pe_forward.1} parent=5 // pred_check_branch
      %227 = sbr.rel (%p225) target = $region40
    $region39: #{mlprender_pe_forward.1} parent=5 // pred_region
      // Predicated region
      $region41: #{mlprender_pe_forward.1} parent=39 // pred_check
        %p228 = pneg %p33
      $region42: #{mlprender_pe_forward.1} parent=39 // pred_check_branch
        %230 = sbr.rel (%p228) target = $region44
      $region43: #{mlprender_pe_forward.1} parent=39 // pred_region
        %s231 = smul.u32 64, %s13
        %p232 = scmp.lt.s32.totalorder %s231, 127
        %s233 = scalar_select %p232, %s231, 127
        %s234 = smul.addr %s233, 4
        %s235 = scalar_lea.vmem %s0, %s234
        %s236 = smul.u32 64, %s13
      $region44: #{mlprender_pe_forward.1} parent=39 // pred_fallthru
        _
    $region40: #{mlprender_pe_forward.1} parent=5 // pred_fallthru
      _
    %p237 = scmp.le.s32.totalorder 1, %s13
    %p238 = scmp.lt.s32.totalorder %s13, 3
    %p239 = pnand %p237, %p238
    %p240 = pneg %p239
    // Predicated region
    $region45: #{mlprender_pe_forward.1} parent=5 // pred_check
      _
    $region46: #{mlprender_pe_forward.1} parent=5 // pred_check_branch
      %242 = sbr.rel (%p239) target = $region48
    $region47: #{mlprender_pe_forward.1} parent=5 // pred_region
      %s243 = ssub.s32 %s13, 1
      %s244 = smul.u32 64, %s18
      %p245 = scmp.lt.s32.totalorder %s244, 127
      %s246 = scalar_select %p245, %s244, 127
      %s247 = smul.addr %s246, 4
      %s248 = scalar_lea.vmem %s0, %s247
      %p249 = pneg %p39
      %p250 = pneg %p36
      %p251 = pneg %p60
      %p252 = pneg %p57
      %p253 = pneg %p81
      %p254 = pneg %p78
      %p255 = pneg %p102
      %p256 = pneg %p99
      %p257 = pneg %p123
      %p258 = pneg %p120
      %p259 = pneg %p144
      %p260 = pneg %p141
      %p261 = pneg %p165
      %p262 = pneg %p162
      %p263 = pneg %p191
      %p264 = pneg %p188
      %s265 = smul.u32 4, %s18
      %p266 = scmp.lt.s32.totalorder %s265, 7
      %s267 = scalar_select %p266, %s265, 7
      %s268 = smul.addr %s267, 4
      %s269 = scalar_lea.vmem %s7, %s268
      %s270 = smul.u32 64, %s18
      %p271 = scmp.lt.s32.totalorder %s270, 127
      %s272 = scalar_select %p271, %s270, 127
      %s273 = smul.addr %s272, 4
      %s274 = scalar_lea.vmem %s0, %s273
      %s275 = smul.u32 64, %s18
      %s276 = smul.u32 4, %s18
      %p277 = scmp.lt.s32.totalorder %s276, 7
      %s278 = scalar_select %p277, %s276, 7
      %s279 = smul.addr %s278, 4
      %s280 = scalar_lea.vmem %s7, %s279
      %s281 = smul.u32 4, %s18
      %v283 = vld [vmem:[%s274] sm:$0xf]
      %v284 = vld [vmem:[%s274 + $0x4] sm:$0xf]
      %v285 = vld [vmem:[%s274 + $0x8] sm:$0xf]
      %v286 = vld [vmem:[%s274 + $0xc] sm:$0xf]
      %v287 = vld [vmem:[%s274 + $0x10] sm:$0xf]
      %v288 = vld [vmem:[%s274 + $0x14] sm:$0xf]
      %v289 = vld [vmem:[%s274 + $0x18] sm:$0xf]
      %v290 = vld [vmem:[%s274 + $0x1c] sm:$0xf]
      %v291 = vld [vmem:[%s274 + $0x20] sm:$0xf]
      %v292 = vld [vmem:[%s274 + $0x24] sm:$0xf]
      %v293 = vld [vmem:[%s274 + $0x28] sm:$0xf]
      %v294 = vld [vmem:[%s274 + $0x2c] sm:$0xf]
      %v295 = vld [vmem:[%s274 + $0x30] sm:$0xf]
      %v296 = vld [vmem:[%s274 + $0x34] sm:$0xf]
      %v297 = vld [vmem:[%s274 + $0x38] sm:$0xf]
      %v298 = vld [vmem:[%s274 + $0x3c] sm:$0xf]
      %v299 = vld [vmem:[%s274 + $0x40] sm:$0xf]
      %v300 = vld [vmem:[%s274 + $0x44] sm:$0xf]
      %v301 = vld [vmem:[%s274 + $0x48] sm:$0xf]
      %v302 = vld [vmem:[%s274 + $0x4c] sm:$0xf]
      %v303 = vld [vmem:[%s274 + $0x50] sm:$0xf]
      %v304 = vld [vmem:[%s274 + $0x54] sm:$0xf]
      %v305 = vld [vmem:[%s274 + $0x58] sm:$0xf]
      %v306 = vld [vmem:[%s274 + $0x5c] sm:$0xf]
      %v307 = vld [vmem:[%s274 + $0x60] sm:$0xf]
      %v308 = vld [vmem:[%s274 + $0x64] sm:$0xf]
      %v309 = vld [vmem:[%s274 + $0x68] sm:$0xf]
      %v310 = vld [vmem:[%s274 + $0x6c] sm:$0xf]
      %v311 = vld [vmem:[%s274 + $0x70] sm:$0xf]
      %v312 = vld [vmem:[%s274 + $0x74] sm:$0xf]
      %v313 = vld [vmem:[%s274 + $0x78] sm:$0xf]
      %v314 = vld [vmem:[%s274 + $0x7c] sm:$0xf]
      %v315 = vld [vmem:[%s274 + $0x80] sm:$0xf]
      %v316 = vld [vmem:[%s274 + $0x84] sm:$0xf]
      %v317 = vld [vmem:[%s274 + $0x88] sm:$0xf]
      %v318 = vld [vmem:[%s274 + $0x8c] sm:$0xf]
      %v319 = vld [vmem:[%s274 + $0x90] sm:$0xf]
      %v320 = vld [vmem:[%s274 + $0x94] sm:$0xf]
      %v321 = vld [vmem:[%s274 + $0x98] sm:$0xf]
      %v322 = vld [vmem:[%s274 + $0x9c] sm:$0xf]
      %v323 = vld [vmem:[%s274 + $0xa0] sm:$0xf]
      %v324 = vld [vmem:[%s274 + $0xa4] sm:$0xf]
      %v325 = vld [vmem:[%s274 + $0xa8] sm:$0xf]
      %v326 = vld [vmem:[%s274 + $0xac] sm:$0xf]
      %v327 = vld [vmem:[%s274 + $0xb0] sm:$0xf]
      %v328 = vld [vmem:[%s274 + $0xb4] sm:$0xf]
      %v329 = vld [vmem:[%s274 + $0xb8] sm:$0xf]
      %v330 = vld [vmem:[%s274 + $0xbc] sm:$0xf]
      %v331 = vld [vmem:[%s274 + $0xc0] sm:$0xf]
      %v332 = vld [vmem:[%s274 + $0xc4] sm:$0xf]
      %v333 = vld [vmem:[%s274 + $0xc8] sm:$0xf]
      %v334 = vld [vmem:[%s274 + $0xcc] sm:$0xf]
      %v335 = vld [vmem:[%s274 + $0xd0] sm:$0xf]
      %v336 = vld [vmem:[%s274 + $0xd4] sm:$0xf]
      %v337 = vld [vmem:[%s274 + $0xd8] sm:$0xf]
      %v338 = vld [vmem:[%s274 + $0xdc] sm:$0xf]
      %v339 = vld [vmem:[%s274 + $0xe0] sm:$0xf]
      %v340 = vld [vmem:[%s274 + $0xe4] sm:$0xf]
      %v341 = vld [vmem:[%s274 + $0xe8] sm:$0xf]
      %v342 = vld [vmem:[%s274 + $0xec] sm:$0xf]
      %v343 = vld [vmem:[%s274 + $0xf0] sm:$0xf]
      %v344 = vld [vmem:[%s274 + $0xf4] sm:$0xf]
      %v345 = vld [vmem:[%s274 + $0xf8] sm:$0xf]
      %v346 = vld [vmem:[%s274 + $0xfc] sm:$0xf]
      %v347 = vld [vmem:[%s1] sm:$0xf]
      %v348 = vld [vmem:[%s1 + $0x4] sm:$0xf]
      %v349 = vld [vmem:[%s1 + $0x8] sm:$0xf]
      %v350 = vld [vmem:[%s1 + $0xc] sm:$0xf]
      %v351 = vld [vmem:[%s1 + $0x10] sm:$0xf]
      %v352 = vld [vmem:[%s1 + $0x14] sm:$0xf]
      %v353 = vld [vmem:[%s1 + $0x18] sm:$0xf]
      %v354 = vld [vmem:[%s1 + $0x1c] sm:$0xf]
      %v355 = vld [vmem:[%s1 + $0x20] sm:$0xf]
      %v356 = vld [vmem:[%s1 + $0x24] sm:$0xf]
      %v357 = vld [vmem:[%s1 + $0x28] sm:$0xf]
      %v358 = vld [vmem:[%s1 + $0x2c] sm:$0xf]
      %v359 = vld [vmem:[%s1 + $0x30] sm:$0x7]
      %v360 = vld [vmem:[%s2] sm:$0x1]
      %v362 = vperm.slane %v360, 0
      %v428 = vunpack.c.l.b16 %v283
      %v429 = vunpack.c.l.b16 %v284
      %v430 = vunpack.c.l.b16 %v285
      %v431 = vunpack.c.l.b16 %v286
      %v432 = vunpack.c.l.b16 %v287
      %v433 = vunpack.c.l.b16 %v288
      %v434 = vunpack.c.l.b16 %v289
      %v435 = vunpack.c.l.b16 %v290
      %v436 = vunpack.c.l.b16 %v291
      %v437 = vunpack.c.l.b16 %v292
      %v438 = vunpack.c.l.b16 %v293
      %v439 = vunpack.c.l.b16 %v294
      %v440 = vunpack.c.l.b16 %v295
      %v441 = vunpack.c.l.b16 %v296
      %v442 = vunpack.c.l.b16 %v297
      %v443 = vunpack.c.l.b16 %v298
      %v444 = vunpack.c.l.b16 %v299
      %v445 = vunpack.c.l.b16 %v300
      %v446 = vunpack.c.l.b16 %v301
      %v447 = vunpack.c.l.b16 %v302
      %v448 = vunpack.c.l.b16 %v303
      %v449 = vunpack.c.l.b16 %v304
      %v450 = vunpack.c.l.b16 %v305
      %v451 = vunpack.c.l.b16 %v306
      %v452 = vunpack.c.l.b16 %v307
      %v453 = vunpack.c.l.b16 %v308
      %v454 = vunpack.c.l.b16 %v309
      %v455 = vunpack.c.l.b16 %v310
      %v456 = vunpack.c.l.b16 %v311
      %v457 = vunpack.c.l.b16 %v312
      %v458 = vunpack.c.l.b16 %v313
      %v459 = vunpack.c.l.b16 %v314
      %v460 = vunpack.c.l.b16 %v315
      %v461 = vunpack.c.l.b16 %v316
      %v462 = vunpack.c.l.b16 %v317
      %v463 = vunpack.c.l.b16 %v318
      %v464 = vunpack.c.l.b16 %v319
      %v465 = vunpack.c.l.b16 %v320
      %v466 = vunpack.c.l.b16 %v321
      %v467 = vunpack.c.l.b16 %v322
      %v468 = vunpack.c.l.b16 %v323
      %v469 = vunpack.c.l.b16 %v324
      %v470 = vunpack.c.l.b16 %v325
      %v471 = vunpack.c.l.b16 %v326
      %v472 = vunpack.c.l.b16 %v327
      %v473 = vunpack.c.l.b16 %v328
      %v474 = vunpack.c.l.b16 %v329
      %v475 = vunpack.c.l.b16 %v330
      %v476 = vunpack.c.l.b16 %v331
      %v477 = vunpack.c.l.b16 %v332
      %v478 = vunpack.c.l.b16 %v333
      %v479 = vunpack.c.l.b16 %v334
      %v480 = vunpack.c.l.b16 %v335
      %v481 = vunpack.c.l.b16 %v336
      %v482 = vunpack.c.l.b16 %v337
      %v483 = vunpack.c.l.b16 %v338
      %v484 = vunpack.c.l.b16 %v339
      %v485 = vunpack.c.l.b16 %v340
      %v486 = vunpack.c.l.b16 %v341
      %v487 = vunpack.c.l.b16 %v342
      %v488 = vunpack.c.l.b16 %v343
      %v489 = vunpack.c.l.b16 %v344
      %v490 = vunpack.c.l.b16 %v345
      %v491 = vunpack.c.l.b16 %v346
      %v492 = vpack.c.b16 %v429, %v428
      %v493 = vpack.c.b16 %v431, %v430
      %v494 = vpack.c.b16 %v433, %v432
      %v495 = vpack.c.b16 %v435, %v434
      %v496 = vpack.c.b16 %v437, %v436
      %v497 = vpack.c.b16 %v439, %v438
      %v498 = vpack.c.b16 %v441, %v440
      %v499 = vpack.c.b16 %v443, %v442
      %v500 = vpack.c.b16 %v445, %v444
      %v501 = vpack.c.b16 %v447, %v446
      %v502 = vpack.c.b16 %v449, %v448
      %v503 = vpack.c.b16 %v451, %v450
      %v504 = vpack.c.b16 %v453, %v452
      %v505 = vpack.c.b16 %v455, %v454
      %v506 = vpack.c.b16 %v457, %v456
      %v507 = vpack.c.b16 %v459, %v458
      %v508 = vpack.c.b16 %v461, %v460
      %v509 = vpack.c.b16 %v463, %v462
      %v510 = vpack.c.b16 %v465, %v464
      %v511 = vpack.c.b16 %v467, %v466
      %v512 = vpack.c.b16 %v469, %v468
      %v513 = vpack.c.b16 %v471, %v470
      %v514 = vpack.c.b16 %v473, %v472
      %v515 = vpack.c.b16 %v475, %v474
      %v516 = vpack.c.b16 %v477, %v476
      %v517 = vpack.c.b16 %v479, %v478
      %v518 = vpack.c.b16 %v481, %v480
      %v519 = vpack.c.b16 %v483, %v482
      %v520 = vpack.c.b16 %v485, %v484
      %v521 = vpack.c.b16 %v487, %v486
      %v522 = vpack.c.b16 %v489, %v488
      %v523 = vpack.c.b16 %v491, %v490
      %v537 = vunpack.c.l.b16 %v347
      %v538 = vunpack.c.l.b16 %v348
      %v539 = vunpack.c.l.b16 %v349
      %v540 = vunpack.c.l.b16 %v350
      %v541 = vunpack.c.l.b16 %v351
      %v542 = vunpack.c.l.b16 %v352
      %v543 = vunpack.c.l.b16 %v353
      %v544 = vunpack.c.l.b16 %v354
      %v545 = vunpack.c.l.b16 %v355
      %v546 = vunpack.c.l.b16 %v356
      %v547 = vunpack.c.l.b16 %v357
      %v548 = vunpack.c.l.b16 %v358
      %v549 = vunpack.c.l.b16 %v359
      %v550 = vpack.c.b16 %v538, %v537
      %v551 = vpack.c.b16 %v540, %v539
      %v552 = vpack.c.b16 %v542, %v541
      %v553 = vpack.c.b16 %v544, %v543
      %v554 = vpack.c.b16 %v546, %v545
      %v555 = vpack.c.b16 %v548, %v547
      %v556 = vpack.c.b16 %v549, %v549
      %vm563 = vcmask 834560
      %v565 = vsel %vm563, %v492, 0
      %v568 = vsel %vm563, %v493, 0
      %v571 = vsel %vm563, %v494, 0
      %v574 = vsel %vm563, %v495, 0
      %v577 = vsel %vm563, %v496, 0
      %v580 = vsel %vm563, %v497, 0
      %v583 = vsel %vm563, %v498, 0
      %v586 = vsel %vm563, %v499, 0
      %v589 = vsel %vm563, %v500, 0
      %v592 = vsel %vm563, %v501, 0
      %v595 = vsel %vm563, %v502, 0
      %v598 = vsel %vm563, %v503, 0
      %v601 = vsel %vm563, %v504, 0
      %v604 = vsel %vm563, %v505, 0
      %v607 = vsel %vm563, %v506, 0
      %v610 = vsel %vm563, %v507, 0
      %v613 = vsel %vm563, %v508, 0
      %v616 = vsel %vm563, %v509, 0
      %v619 = vsel %vm563, %v510, 0
      %v622 = vsel %vm563, %v511, 0
      %v625 = vsel %vm563, %v512, 0
      %v628 = vsel %vm563, %v513, 0
      %v631 = vsel %vm563, %v514, 0
      %v634 = vsel %vm563, %v515, 0
      %v637 = vsel %vm563, %v516, 0
      %v640 = vsel %vm563, %v517, 0
      %v643 = vsel %vm563, %v518, 0
      %v646 = vsel %vm563, %v519, 0
      %v649 = vsel %vm563, %v520, 0
      %v652 = vsel %vm563, %v521, 0
      %v655 = vsel %vm563, %v522, 0
      %v658 = vsel %vm563, %v523, 0
      %vm660 = vcmask 1042432
      %v662 = vsel %vm660, %v556, 0
      %664 = vmatpush.bf16.msra.mxu0 0
      %665 = vmatpush.bf16.msra.mxu0 %v662
      %666 = vmatpush.bf16.msra.mxu0 %v555
      %667 = vmatpush.bf16.msra.mxu0 %v554
      %668 = vmatpush.bf16.msra.mxu0 %v553
      %669 = vmatpush.bf16.msra.mxu0 %v552
      %670 = vmatpush.bf16.msra.mxu0 %v551
      %671 = vmatpush.bf16.msra.mxu0 %v550
      %672 = vmatmul.bf16.gmra.mxu0 %v565
      %v673 = vpop.f32.mrf.mxu0
      %v674 = vadd.f32 %v362, %v673
      %v675 = vpop.f32.mrf.mxu0
      %v676 = vadd.f32 %v362, %v675
      %677 = vmatmul.bf16.gmra.mxu0 %v568
      %v678 = vpop.f32.mrf.mxu0
      %v679 = vadd.f32 %v362, %v678
      %v680 = vpop.f32.mrf.mxu0
      %v681 = vadd.f32 %v362, %v680
      %682 = vmatmul.bf16.gmra.mxu0 %v571
      %v683 = vpop.f32.mrf.mxu0
      %v684 = vadd.f32 %v362, %v683
      %v685 = vpop.f32.mrf.mxu0
      %v686 = vadd.f32 %v362, %v685
      %687 = vmatmul.bf16.gmra.mxu0 %v574
      %v688 = vpop.f32.mrf.mxu0
      %v689 = vadd.f32 %v362, %v688
      %v690 = vpop.f32.mrf.mxu0
      %v691 = vadd.f32 %v362, %v690
      %692 = vmatmul.bf16.gmra.mxu0 %v577
      %v693 = vpop.f32.mrf.mxu0
      %v694 = vadd.f32 %v362, %v693
      %v695 = vpop.f32.mrf.mxu0
      %v696 = vadd.f32 %v362, %v695
      %697 = vmatmul.bf16.gmra.mxu0 %v580
      %v698 = vpop.f32.mrf.mxu0
      %v699 = vadd.f32 %v362, %v698
      %v700 = vpop.f32.mrf.mxu0
      %v701 = vadd.f32 %v362, %v700
      %702 = vmatmul.bf16.gmra.mxu0 %v583
      %v703 = vpop.f32.mrf.mxu0
      %v704 = vadd.f32 %v362, %v703
      %v705 = vpop.f32.mrf.mxu0
      %v706 = vadd.f32 %v362, %v705
      %707 = vmatmul.bf16.gmra.mxu0 %v586
      %v708 = vpop.f32.mrf.mxu0
      %v709 = vadd.f32 %v362, %v708
      %v710 = vpop.f32.mrf.mxu0
      %v711 = vadd.f32 %v362, %v710
      %712 = vmatmul.bf16.gmra.mxu0 %v589
      %v713 = vpop.f32.mrf.mxu0
      %v714 = vadd.f32 %v362, %v713
      %v715 = vpop.f32.mrf.mxu0
      %v716 = vadd.f32 %v362, %v715
      %717 = vmatmul.bf16.gmra.mxu0 %v592
      %v718 = vpop.f32.mrf.mxu0
      %v719 = vadd.f32 %v362, %v718
      %v720 = vpop.f32.mrf.mxu0
      %v721 = vadd.f32 %v362, %v720
      %722 = vmatmul.bf16.gmra.mxu0 %v595
      %v723 = vpop.f32.mrf.mxu0
      %v724 = vadd.f32 %v362, %v723
      %v725 = vpop.f32.mrf.mxu0
      %v726 = vadd.f32 %v362, %v725
      %727 = vmatmul.bf16.gmra.mxu0 %v598
      %v728 = vpop.f32.mrf.mxu0
      %v729 = vadd.f32 %v362, %v728
      %v730 = vpop.f32.mrf.mxu0
      %v731 = vadd.f32 %v362, %v730
      %732 = vmatmul.bf16.gmra.mxu0 %v601
      %v733 = vpop.f32.mrf.mxu0
      %v734 = vadd.f32 %v362, %v733
      %v735 = vpop.f32.mrf.mxu0
      %v736 = vadd.f32 %v362, %v735
      %737 = vmatmul.bf16.gmra.mxu0 %v604
      %v738 = vpop.f32.mrf.mxu0
      %v739 = vadd.f32 %v362, %v738
      %v740 = vpop.f32.mrf.mxu0
      %v741 = vadd.f32 %v362, %v740
      %742 = vmatmul.bf16.gmra.mxu0 %v607
      %v743 = vpop.f32.mrf.mxu0
      %v744 = vadd.f32 %v362, %v743
      %v745 = vpop.f32.mrf.mxu0
      %v746 = vadd.f32 %v362, %v745
      %747 = vmatmul.bf16.gmra.mxu0 %v610
      %v748 = vpop.f32.mrf.mxu0
      %v749 = vadd.f32 %v362, %v748
      %v750 = vpop.f32.mrf.mxu0
      %v751 = vadd.f32 %v362, %v750
      %752 = vmatmul.bf16.gmra.mxu0 %v613
      %v753 = vpop.f32.mrf.mxu0
      %v754 = vadd.f32 %v362, %v753
      %v755 = vpop.f32.mrf.mxu0
      %v756 = vadd.f32 %v362, %v755
      %757 = vmatmul.bf16.gmra.mxu0 %v616
      %v758 = vpop.f32.mrf.mxu0
      %v759 = vadd.f32 %v362, %v758
      %v760 = vpop.f32.mrf.mxu0
      %v761 = vadd.f32 %v362, %v760
      %762 = vmatmul.bf16.gmra.mxu0 %v619
      %v763 = vpop.f32.mrf.mxu0
      %v764 = vadd.f32 %v362, %v763
      %v765 = vpop.f32.mrf.mxu0
      %v766 = vadd.f32 %v362, %v765
      %767 = vmatmul.bf16.gmra.mxu0 %v622
      %v768 = vpop.f32.mrf.mxu0
      %v769 = vadd.f32 %v362, %v768
      %v770 = vpop.f32.mrf.mxu0
      %v771 = vadd.f32 %v362, %v770
      %772 = vmatmul.bf16.gmra.mxu0 %v625
      %v773 = vpop.f32.mrf.mxu0
      %v774 = vadd.f32 %v362, %v773
      %v775 = vpop.f32.mrf.mxu0
      %v776 = vadd.f32 %v362, %v775
      %777 = vmatmul.bf16.gmra.mxu0 %v628
      %v778 = vpop.f32.mrf.mxu0
      %v779 = vadd.f32 %v362, %v778
      %v780 = vpop.f32.mrf.mxu0
      %v781 = vadd.f32 %v362, %v780
      %782 = vmatmul.bf16.gmra.mxu0 %v631
      %v783 = vpop.f32.mrf.mxu0
      %v784 = vadd.f32 %v362, %v783
      %v785 = vpop.f32.mrf.mxu0
      %v786 = vadd.f32 %v362, %v785
      %787 = vmatmul.bf16.gmra.mxu0 %v634
      %v788 = vpop.f32.mrf.mxu0
      %v789 = vadd.f32 %v362, %v788
      %v790 = vpop.f32.mrf.mxu0
      %v791 = vadd.f32 %v362, %v790
      %792 = vmatmul.bf16.gmra.mxu0 %v637
      %v793 = vpop.f32.mrf.mxu0
      %v794 = vadd.f32 %v362, %v793
      %v795 = vpop.f32.mrf.mxu0
      %v796 = vadd.f32 %v362, %v795
      %797 = vmatmul.bf16.gmra.mxu0 %v640
      %v798 = vpop.f32.mrf.mxu0
      %v799 = vadd.f32 %v362, %v798
      %v800 = vpop.f32.mrf.mxu0
      %v801 = vadd.f32 %v362, %v800
      %802 = vmatmul.bf16.gmra.mxu0 %v643
      %v803 = vpop.f32.mrf.mxu0
      %v804 = vadd.f32 %v362, %v803
      %v805 = vpop.f32.mrf.mxu0
      %v806 = vadd.f32 %v362, %v805
      %807 = vmatmul.bf16.gmra.mxu0 %v646
      %v808 = vpop.f32.mrf.mxu0
      %v809 = vadd.f32 %v362, %v808
      %v810 = vpop.f32.mrf.mxu0
      %v811 = vadd.f32 %v362, %v810
      %812 = vmatmul.bf16.gmra.mxu0 %v649
      %v813 = vpop.f32.mrf.mxu0
      %v814 = vadd.f32 %v362, %v813
      %v815 = vpop.f32.mrf.mxu0
      %v816 = vadd.f32 %v362, %v815
      %817 = vmatmul.bf16.gmra.mxu0 %v652
      %v818 = vpop.f32.mrf.mxu0
      %v819 = vadd.f32 %v362, %v818
      %v820 = vpop.f32.mrf.mxu0
      %v821 = vadd.f32 %v362, %v820
      %822 = vmatmul.bf16.gmra.mxu0 %v655
      %v823 = vpop.f32.mrf.mxu0
      %v824 = vadd.f32 %v362, %v823
      %v825 = vpop.f32.mrf.mxu0
      %v826 = vadd.f32 %v362, %v825
      %827 = vmatmul.bf16.gmra.mxu0 %v658
      %v828 = vpop.f32.mrf.mxu0
      %v829 = vadd.f32 %v362, %v828
      %v830 = vpop.f32.mrf.mxu0
      %v831 = vadd.f32 %v362, %v830
      %832 = vdwg.mxu0
      %v833 = vmax.f32 %v674, 0.0
      %v834 = vmax.f32 %v676, 0.0
      %v835 = vmax.f32 %v679, 0.0
      %v836 = vmax.f32 %v681, 0.0
      %v837 = vmax.f32 %v684, 0.0
      %v838 = vmax.f32 %v686, 0.0
      %v839 = vmax.f32 %v689, 0.0
      %v840 = vmax.f32 %v691, 0.0
      %v841 = vmax.f32 %v694, 0.0
      %v842 = vmax.f32 %v696, 0.0
      %v843 = vmax.f32 %v699, 0.0
      %v844 = vmax.f32 %v701, 0.0
      %v845 = vmax.f32 %v704, 0.0
      %v846 = vmax.f32 %v706, 0.0
      %v847 = vmax.f32 %v709, 0.0
      %v848 = vmax.f32 %v711, 0.0
      %v849 = vmax.f32 %v714, 0.0
      %v850 = vmax.f32 %v716, 0.0
      %v851 = vmax.f32 %v719, 0.0
      %v852 = vmax.f32 %v721, 0.0
      %v853 = vmax.f32 %v724, 0.0
      %v854 = vmax.f32 %v726, 0.0
      %v855 = vmax.f32 %v729, 0.0
      %v856 = vmax.f32 %v731, 0.0
      %v857 = vmax.f32 %v734, 0.0
      %v858 = vmax.f32 %v736, 0.0
      %v859 = vmax.f32 %v739, 0.0
      %v860 = vmax.f32 %v741, 0.0
      %v861 = vmax.f32 %v744, 0.0
      %v862 = vmax.f32 %v746, 0.0
      %v863 = vmax.f32 %v749, 0.0
      %v864 = vmax.f32 %v751, 0.0
      %v865 = vmax.f32 %v754, 0.0
      %v866 = vmax.f32 %v756, 0.0
      %v867 = vmax.f32 %v759, 0.0
      %v868 = vmax.f32 %v761, 0.0
      %v869 = vmax.f32 %v764, 0.0
      %v870 = vmax.f32 %v766, 0.0
      %v871 = vmax.f32 %v769, 0.0
      %v872 = vmax.f32 %v771, 0.0
      %v873 = vmax.f32 %v774, 0.0
      %v874 = vmax.f32 %v776, 0.0
      %v875 = vmax.f32 %v779, 0.0
      %v876 = vmax.f32 %v781, 0.0
      %v877 = vmax.f32 %v784, 0.0
      %v878 = vmax.f32 %v786, 0.0
      %v879 = vmax.f32 %v789, 0.0
      %v880 = vmax.f32 %v791, 0.0
      %v881 = vmax.f32 %v794, 0.0
      %v882 = vmax.f32 %v796, 0.0
      %v883 = vmax.f32 %v799, 0.0
      %v884 = vmax.f32 %v801, 0.0
      %v885 = vmax.f32 %v804, 0.0
      %v886 = vmax.f32 %v806, 0.0
      %v887 = vmax.f32 %v809, 0.0
      %v888 = vmax.f32 %v811, 0.0
      %v889 = vmax.f32 %v814, 0.0
      %v890 = vmax.f32 %v816, 0.0
      %v891 = vmax.f32 %v819, 0.0
      %v892 = vmax.f32 %v821, 0.0
      %v893 = vmax.f32 %v824, 0.0
      %v894 = vmax.f32 %v826, 0.0
      %v895 = vmax.f32 %v829, 0.0
      %v896 = vmax.f32 %v831, 0.0
      %v897 = vpack.c.bf16 %v834, %v833
      %v898 = vpack.c.bf16 %v836, %v835
      %v899 = vpack.c.bf16 %v838, %v837
      %v900 = vpack.c.bf16 %v840, %v839
      %v901 = vpack.c.bf16 %v842, %v841
      %v902 = vpack.c.bf16 %v844, %v843
      %v903 = vpack.c.bf16 %v846, %v845
      %v904 = vpack.c.bf16 %v848, %v847
      %v905 = vpack.c.bf16 %v850, %v849
      %v906 = vpack.c.bf16 %v852, %v851
      %v907 = vpack.c.bf16 %v854, %v853
      %v908 = vpack.c.bf16 %v856, %v855
      %v909 = vpack.c.bf16 %v858, %v857
      %v910 = vpack.c.bf16 %v860, %v859
      %v911 = vpack.c.bf16 %v862, %v861
      %v912 = vpack.c.bf16 %v864, %v863
      %v913 = vpack.c.bf16 %v866, %v865
      %v914 = vpack.c.bf16 %v868, %v867
      %v915 = vpack.c.bf16 %v870, %v869
      %v916 = vpack.c.bf16 %v872, %v871
      %v917 = vpack.c.bf16 %v874, %v873
      %v918 = vpack.c.bf16 %v876, %v875
      %v919 = vpack.c.bf16 %v878, %v877
      %v920 = vpack.c.bf16 %v880, %v879
      %v921 = vpack.c.bf16 %v882, %v881
      %v922 = vpack.c.bf16 %v884, %v883
      %v923 = vpack.c.bf16 %v886, %v885
      %v924 = vpack.c.bf16 %v888, %v887
      %v925 = vpack.c.bf16 %v890, %v889
      %v926 = vpack.c.bf16 %v892, %v891
      %v927 = vpack.c.bf16 %v894, %v893
      %v928 = vpack.c.bf16 %v896, %v895
      %v929 = vld [vmem:[%s3] sm:$0xf]
      %v930 = vld [vmem:[%s3 + $0x4] sm:$0xf]
      %v931 = vld [vmem:[%s3 + $0x8] sm:$0xf]
      %v932 = vld [vmem:[%s3 + $0xc] sm:$0xf]
      %v933 = vld [vmem:[%s3 + $0x10] sm:$0xf]
      %v934 = vld [vmem:[%s3 + $0x14] sm:$0xf]
      %v935 = vld [vmem:[%s3 + $0x18] sm:$0xf]
      %v936 = vld [vmem:[%s3 + $0x1c] sm:$0xf]
      %v937 = vld [vmem:[%s3 + $0x20] sm:$0xf]
      %v938 = vld [vmem:[%s3 + $0x24] sm:$0xf]
      %v939 = vld [vmem:[%s3 + $0x28] sm:$0xf]
      %v940 = vld [vmem:[%s3 + $0x2c] sm:$0xf]
      %v941 = vld [vmem:[%s3 + $0x30] sm:$0xf]
      %v942 = vld [vmem:[%s3 + $0x34] sm:$0xf]
      %v943 = vld [vmem:[%s3 + $0x38] sm:$0xf]
      %v944 = vld [vmem:[%s3 + $0x3c] sm:$0xf]
      %v945 = vld [vmem:[%s4] sm:$0x1]
      %v947 = vperm.slane %v945, 0
      %v965 = vunpack.c.l.b16 %v929
      %v966 = vunpack.c.l.b16 %v930
      %v967 = vunpack.c.l.b16 %v931
      %v968 = vunpack.c.l.b16 %v932
      %v969 = vunpack.c.l.b16 %v933
      %v970 = vunpack.c.l.b16 %v934
      %v971 = vunpack.c.l.b16 %v935
      %v972 = vunpack.c.l.b16 %v936
      %v973 = vunpack.c.l.b16 %v937
      %v974 = vunpack.c.l.b16 %v938
      %v975 = vunpack.c.l.b16 %v939
      %v976 = vunpack.c.l.b16 %v940
      %v977 = vunpack.c.l.b16 %v941
      %v978 = vunpack.c.l.b16 %v942
      %v979 = vunpack.c.l.b16 %v943
      %v980 = vunpack.c.l.b16 %v944
      %v981 = vpack.c.b16 %v966, %v965
      %v982 = vpack.c.b16 %v968, %v967
      %v983 = vpack.c.b16 %v970, %v969
      %v984 = vpack.c.b16 %v972, %v971
      %v985 = vpack.c.b16 %v974, %v973
      %v986 = vpack.c.b16 %v976, %v975
      %v987 = vpack.c.b16 %v978, %v977
      %v988 = vpack.c.b16 %v980, %v979
      %997 = vmatpush.bf16.msra.mxu0 %v988
      %998 = vmatpush.bf16.msra.mxu0 %v987
      %999 = vmatpush.bf16.msra.mxu0 %v986
      %1000 = vmatpush.bf16.msra.mxu0 %v985
      %1001 = vmatpush.bf16.msra.mxu0 %v984
      %1002 = vmatpush.bf16.msra.mxu0 %v983
      %1003 = vmatpush.bf16.msra.mxu0 %v982
      %1004 = vmatpush.bf16.msra.mxu0 %v981
      %1005 = vmatmul.bf16.gmra.mxu0 %v897
      %v1006 = vpop.f32.mrf.mxu0
      %v1007 = vadd.f32 %v947, %v1006
      %v1008 = vpop.f32.mrf.mxu0
      %v1009 = vadd.f32 %v947, %v1008
      %1010 = vmatmul.bf16.gmra.mxu0 %v898
      %v1011 = vpop.f32.mrf.mxu0
      %v1012 = vadd.f32 %v947, %v1011
      %v1013 = vpop.f32.mrf.mxu0
      %v1014 = vadd.f32 %v947, %v1013
      %1015 = vmatmul.bf16.gmra.mxu0 %v899
      %v1016 = vpop.f32.mrf.mxu0
      %v1017 = vadd.f32 %v947, %v1016
      %v1018 = vpop.f32.mrf.mxu0
      %v1019 = vadd.f32 %v947, %v1018
      %1020 = vmatmul.bf16.gmra.mxu0 %v900
      %v1021 = vpop.f32.mrf.mxu0
      %v1022 = vadd.f32 %v947, %v1021
      %v1023 = vpop.f32.mrf.mxu0
      %v1024 = vadd.f32 %v947, %v1023
      %1025 = vmatmul.bf16.gmra.mxu0 %v901
      %v1026 = vpop.f32.mrf.mxu0
      %v1027 = vadd.f32 %v947, %v1026
      %v1028 = vpop.f32.mrf.mxu0
      %v1029 = vadd.f32 %v947, %v1028
      %1030 = vmatmul.bf16.gmra.mxu0 %v902
      %v1031 = vpop.f32.mrf.mxu0
      %v1032 = vadd.f32 %v947, %v1031
      %v1033 = vpop.f32.mrf.mxu0
      %v1034 = vadd.f32 %v947, %v1033
      %1035 = vmatmul.bf16.gmra.mxu0 %v903
      %v1036 = vpop.f32.mrf.mxu0
      %v1037 = vadd.f32 %v947, %v1036
      %v1038 = vpop.f32.mrf.mxu0
      %v1039 = vadd.f32 %v947, %v1038
      %1040 = vmatmul.bf16.gmra.mxu0 %v904
      %v1041 = vpop.f32.mrf.mxu0
      %v1042 = vadd.f32 %v947, %v1041
      %v1043 = vpop.f32.mrf.mxu0
      %v1044 = vadd.f32 %v947, %v1043
      %1045 = vmatmul.bf16.gmra.mxu0 %v905
      %v1046 = vpop.f32.mrf.mxu0
      %v1047 = vadd.f32 %v947, %v1046
      %v1048 = vpop.f32.mrf.mxu0
      %v1049 = vadd.f32 %v947, %v1048
      %1050 = vmatmul.bf16.gmra.mxu0 %v906
      %v1051 = vpop.f32.mrf.mxu0
      %v1052 = vadd.f32 %v947, %v1051
      %v1053 = vpop.f32.mrf.mxu0
      %v1054 = vadd.f32 %v947, %v1053
      %1055 = vmatmul.bf16.gmra.mxu0 %v907
      %v1056 = vpop.f32.mrf.mxu0
      %v1057 = vadd.f32 %v947, %v1056
      %v1058 = vpop.f32.mrf.mxu0
      %v1059 = vadd.f32 %v947, %v1058
      %1060 = vmatmul.bf16.gmra.mxu0 %v908
      %v1061 = vpop.f32.mrf.mxu0
      %v1062 = vadd.f32 %v947, %v1061
      %v1063 = vpop.f32.mrf.mxu0
      %v1064 = vadd.f32 %v947, %v1063
      %1065 = vmatmul.bf16.gmra.mxu0 %v909
      %v1066 = vpop.f32.mrf.mxu0
      %v1067 = vadd.f32 %v947, %v1066
      %v1068 = vpop.f32.mrf.mxu0
      %v1069 = vadd.f32 %v947, %v1068
      %1070 = vmatmul.bf16.gmra.mxu0 %v910
      %v1071 = vpop.f32.mrf.mxu0
      %v1072 = vadd.f32 %v947, %v1071
      %v1073 = vpop.f32.mrf.mxu0
      %v1074 = vadd.f32 %v947, %v1073
      %1075 = vmatmul.bf16.gmra.mxu0 %v911
      %v1076 = vpop.f32.mrf.mxu0
      %v1077 = vadd.f32 %v947, %v1076
      %v1078 = vpop.f32.mrf.mxu0
      %v1079 = vadd.f32 %v947, %v1078
      %1080 = vmatmul.bf16.gmra.mxu0 %v912
      %v1081 = vpop.f32.mrf.mxu0
      %v1082 = vadd.f32 %v947, %v1081
      %v1083 = vpop.f32.mrf.mxu0
      %v1084 = vadd.f32 %v947, %v1083
      %1085 = vmatmul.bf16.gmra.mxu0 %v913
      %v1086 = vpop.f32.mrf.mxu0
      %v1087 = vadd.f32 %v947, %v1086
      %v1088 = vpop.f32.mrf.mxu0
      %v1089 = vadd.f32 %v947, %v1088
      %1090 = vmatmul.bf16.gmra.mxu0 %v914
      %v1091 = vpop.f32.mrf.mxu0
      %v1092 = vadd.f32 %v947, %v1091
      %v1093 = vpop.f32.mrf.mxu0
      %v1094 = vadd.f32 %v947, %v1093
      %1095 = vmatmul.bf16.gmra.mxu0 %v915
      %v1096 = vpop.f32.mrf.mxu0
      %v1097 = vadd.f32 %v947, %v1096
      %v1098 = vpop.f32.mrf.mxu0
      %v1099 = vadd.f32 %v947, %v1098
      %1100 = vmatmul.bf16.gmra.mxu0 %v916
      %v1101 = vpop.f32.mrf.mxu0
      %v1102 = vadd.f32 %v947, %v1101
      %v1103 = vpop.f32.mrf.mxu0
      %v1104 = vadd.f32 %v947, %v1103
      %1105 = vmatmul.bf16.gmra.mxu0 %v917
      %v1106 = vpop.f32.mrf.mxu0
      %v1107 = vadd.f32 %v947, %v1106
      %v1108 = vpop.f32.mrf.mxu0
      %v1109 = vadd.f32 %v947, %v1108
      %1110 = vmatmul.bf16.gmra.mxu0 %v918
      %v1111 = vpop.f32.mrf.mxu0
      %v1112 = vadd.f32 %v947, %v1111
      %v1113 = vpop.f32.mrf.mxu0
      %v1114 = vadd.f32 %v947, %v1113
      %1115 = vmatmul.bf16.gmra.mxu0 %v919
      %v1116 = vpop.f32.mrf.mxu0
      %v1117 = vadd.f32 %v947, %v1116
      %v1118 = vpop.f32.mrf.mxu0
      %v1119 = vadd.f32 %v947, %v1118
      %1120 = vmatmul.bf16.gmra.mxu0 %v920
      %v1121 = vpop.f32.mrf.mxu0
      %v1122 = vadd.f32 %v947, %v1121
      %v1123 = vpop.f32.mrf.mxu0
      %v1124 = vadd.f32 %v947, %v1123
      %1125 = vmatmul.bf16.gmra.mxu0 %v921
      %v1126 = vpop.f32.mrf.mxu0
      %v1127 = vadd.f32 %v947, %v1126
      %v1128 = vpop.f32.mrf.mxu0
      %v1129 = vadd.f32 %v947, %v1128
      %1130 = vmatmul.bf16.gmra.mxu0 %v922
      %v1131 = vpop.f32.mrf.mxu0
      %v1132 = vadd.f32 %v947, %v1131
      %v1133 = vpop.f32.mrf.mxu0
      %v1134 = vadd.f32 %v947, %v1133
      %1135 = vmatmul.bf16.gmra.mxu0 %v923
      %v1136 = vpop.f32.mrf.mxu0
      %v1137 = vadd.f32 %v947, %v1136
      %v1138 = vpop.f32.mrf.mxu0
      %v1139 = vadd.f32 %v947, %v1138
      %1140 = vmatmul.bf16.gmra.mxu0 %v924
      %v1141 = vpop.f32.mrf.mxu0
      %v1142 = vadd.f32 %v947, %v1141
      %v1143 = vpop.f32.mrf.mxu0
      %v1144 = vadd.f32 %v947, %v1143
      %1145 = vmatmul.bf16.gmra.mxu0 %v925
      %v1146 = vpop.f32.mrf.mxu0
      %v1147 = vadd.f32 %v947, %v1146
      %v1148 = vpop.f32.mrf.mxu0
      %v1149 = vadd.f32 %v947, %v1148
      %1150 = vmatmul.bf16.gmra.mxu0 %v926
      %v1151 = vpop.f32.mrf.mxu0
      %v1152 = vadd.f32 %v947, %v1151
      %v1153 = vpop.f32.mrf.mxu0
      %v1154 = vadd.f32 %v947, %v1153
      %1155 = vmatmul.bf16.gmra.mxu0 %v927
      %v1156 = vpop.f32.mrf.mxu0
      %v1157 = vadd.f32 %v947, %v1156
      %v1158 = vpop.f32.mrf.mxu0
      %v1159 = vadd.f32 %v947, %v1158
      %1160 = vmatmul.bf16.gmra.mxu0 %v928
      %v1161 = vpop.f32.mrf.mxu0
      %v1162 = vadd.f32 %v947, %v1161
      %v1163 = vpop.f32.mrf.mxu0
      %v1164 = vadd.f32 %v947, %v1163
      %1165 = vdwg.mxu0
      %v1166 = vmax.f32 %v1007, 0.0
      %v1167 = vmax.f32 %v1009, 0.0
      %v1168 = vmax.f32 %v1012, 0.0
      %v1169 = vmax.f32 %v1014, 0.0
      %v1170 = vmax.f32 %v1017, 0.0
      %v1171 = vmax.f32 %v1019, 0.0
      %v1172 = vmax.f32 %v1022, 0.0
      %v1173 = vmax.f32 %v1024, 0.0
      %v1174 = vmax.f32 %v1027, 0.0
      %v1175 = vmax.f32 %v1029, 0.0
      %v1176 = vmax.f32 %v1032, 0.0
      %v1177 = vmax.f32 %v1034, 0.0
      %v1178 = vmax.f32 %v1037, 0.0
      %v1179 = vmax.f32 %v1039, 0.0
      %v1180 = vmax.f32 %v1042, 0.0
      %v1181 = vmax.f32 %v1044, 0.0
      %v1182 = vmax.f32 %v1047, 0.0
      %v1183 = vmax.f32 %v1049, 0.0
      %v1184 = vmax.f32 %v1052, 0.0
      %v1185 = vmax.f32 %v1054, 0.0
      %v1186 = vmax.f32 %v1057, 0.0
      %v1187 = vmax.f32 %v1059, 0.0
      %v1188 = vmax.f32 %v1062, 0.0
      %v1189 = vmax.f32 %v1064, 0.0
      %v1190 = vmax.f32 %v1067, 0.0
      %v1191 = vmax.f32 %v1069, 0.0
      %v1192 = vmax.f32 %v1072, 0.0
      %v1193 = vmax.f32 %v1074, 0.0
      %v1194 = vmax.f32 %v1077, 0.0
      %v1195 = vmax.f32 %v1079, 0.0
      %v1196 = vmax.f32 %v1082, 0.0
      %v1197 = vmax.f32 %v1084, 0.0
      %v1198 = vmax.f32 %v1087, 0.0
      %v1199 = vmax.f32 %v1089, 0.0
      %v1200 = vmax.f32 %v1092, 0.0
      %v1201 = vmax.f32 %v1094, 0.0
      %v1202 = vmax.f32 %v1097, 0.0
      %v1203 = vmax.f32 %v1099, 0.0
      %v1204 = vmax.f32 %v1102, 0.0
      %v1205 = vmax.f32 %v1104, 0.0
      %v1206 = vmax.f32 %v1107, 0.0
      %v1207 = vmax.f32 %v1109, 0.0
      %v1208 = vmax.f32 %v1112, 0.0
      %v1209 = vmax.f32 %v1114, 0.0
      %v1210 = vmax.f32 %v1117, 0.0
      %v1211 = vmax.f32 %v1119, 0.0
      %v1212 = vmax.f32 %v1122, 0.0
      %v1213 = vmax.f32 %v1124, 0.0
      %v1214 = vmax.f32 %v1127, 0.0
      %v1215 = vmax.f32 %v1129, 0.0
      %v1216 = vmax.f32 %v1132, 0.0
      %v1217 = vmax.f32 %v1134, 0.0
      %v1218 = vmax.f32 %v1137, 0.0
      %v1219 = vmax.f32 %v1139, 0.0
      %v1220 = vmax.f32 %v1142, 0.0
      %v1221 = vmax.f32 %v1144, 0.0
      %v1222 = vmax.f32 %v1147, 0.0
      %v1223 = vmax.f32 %v1149, 0.0
      %v1224 = vmax.f32 %v1152, 0.0
      %v1225 = vmax.f32 %v1154, 0.0
      %v1226 = vmax.f32 %v1157, 0.0
      %v1227 = vmax.f32 %v1159, 0.0
      %v1228 = vmax.f32 %v1162, 0.0
      %v1229 = vmax.f32 %v1164, 0.0
      %v1230 = vpack.c.bf16 %v1167, %v1166
      %v1231 = vpack.c.bf16 %v1169, %v1168
      %v1232 = vpack.c.bf16 %v1171, %v1170
      %v1233 = vpack.c.bf16 %v1173, %v1172
      %v1234 = vpack.c.bf16 %v1175, %v1174
      %v1235 = vpack.c.bf16 %v1177, %v1176
      %v1236 = vpack.c.bf16 %v1179, %v1178
      %v1237 = vpack.c.bf16 %v1181, %v1180
      %v1238 = vpack.c.bf16 %v1183, %v1182
      %v1239 = vpack.c.bf16 %v1185, %v1184
      %v1240 = vpack.c.bf16 %v1187, %v1186
      %v1241 = vpack.c.bf16 %v1189, %v1188
      %v1242 = vpack.c.bf16 %v1191, %v1190
      %v1243 = vpack.c.bf16 %v1193, %v1192
      %v1244 = vpack.c.bf16 %v1195, %v1194
      %v1245 = vpack.c.bf16 %v1197, %v1196
      %v1246 = vpack.c.bf16 %v1199, %v1198
      %v1247 = vpack.c.bf16 %v1201, %v1200
      %v1248 = vpack.c.bf16 %v1203, %v1202
      %v1249 = vpack.c.bf16 %v1205, %v1204
      %v1250 = vpack.c.bf16 %v1207, %v1206
      %v1251 = vpack.c.bf16 %v1209, %v1208
      %v1252 = vpack.c.bf16 %v1211, %v1210
      %v1253 = vpack.c.bf16 %v1213, %v1212
      %v1254 = vpack.c.bf16 %v1215, %v1214
      %v1255 = vpack.c.bf16 %v1217, %v1216
      %v1256 = vpack.c.bf16 %v1219, %v1218
      %v1257 = vpack.c.bf16 %v1221, %v1220
      %v1258 = vpack.c.bf16 %v1223, %v1222
      %v1259 = vpack.c.bf16 %v1225, %v1224
      %v1260 = vpack.c.bf16 %v1227, %v1226
      %v1261 = vpack.c.bf16 %v1229, %v1228
      %v1262 = vld [vmem:[%s5] sm:$0x3]
      %v1263 = vld [vmem:[%s6] sm:$0x7]
      %1265 = vset.pattern.permute.xlu0 0
      %1266 = vperm.xlu0 %1265, %v1263
      %v1267 = vpop.permute.xlu0 %1266
      %1269 = vmatpush.bf16.xpose.msra.mxu0 %v1237
      %1270 = vmatpush.bf16.xpose.msra.mxu0 %v1236
      %1271 = vmatpush.bf16.xpose.msra.mxu0 %v1235
      %1272 = vmatpush.bf16.xpose.msra.mxu0 %v1234
      %1273 = vmatpush.bf16.xpose.msra.mxu0 %v1233
      %1274 = vmatpush.bf16.xpose.msra.mxu0 %v1232
      %1275 = vmatpush.bf16.xpose.msra.mxu0 %v1231
      %1276 = vmatpush.bf16.xpose.msra.mxu0 %v1230
      %1277 = vmatmul.bf16.gmra.mxu0 %v1262
      %v1278 = vpop.f32.mrf.mxu0
      %v1279 = vadd.f32 %v1267, %v1278
      %v1280 = vpop.f32.mrf.mxu0
      %1281 = vdwg.mxu0
      %1282 = vmatpush.bf16.xpose.msra.mxu0 %v1245
      %1283 = vmatpush.bf16.xpose.msra.mxu0 %v1244
      %1284 = vmatpush.bf16.xpose.msra.mxu0 %v1243
      %1285 = vmatpush.bf16.xpose.msra.mxu0 %v1242
      %1286 = vmatpush.bf16.xpose.msra.mxu0 %v1241
      %1287 = vmatpush.bf16.xpose.msra.mxu0 %v1240
      %1288 = vmatpush.bf16.xpose.msra.mxu0 %v1239
      %1289 = vmatpush.bf16.xpose.msra.mxu0 %v1238
      %1290 = vmatmul.bf16.gmra.mxu0 %v1262
      %v1291 = vpop.f32.mrf.mxu0
      %v1292 = vadd.f32 %v1267, %v1291
      %v1293 = vpop.f32.mrf.mxu0
      %1294 = vdwg.mxu0
      %1295 = vmatpush.bf16.xpose.msra.mxu0 %v1253
      %1296 = vmatpush.bf16.xpose.msra.mxu0 %v1252
      %1297 = vmatpush.bf16.xpose.msra.mxu0 %v1251
      %1298 = vmatpush.bf16.xpose.msra.mxu0 %v1250
      %1299 = vmatpush.bf16.xpose.msra.mxu0 %v1249
      %1300 = vmatpush.bf16.xpose.msra.mxu0 %v1248
      %1301 = vmatpush.bf16.xpose.msra.mxu0 %v1247
      %1302 = vmatpush.bf16.xpose.msra.mxu0 %v1246
      %1303 = vmatmul.bf16.gmra.mxu0 %v1262
      %v1304 = vpop.f32.mrf.mxu0
      %v1305 = vadd.f32 %v1267, %v1304
      %v1306 = vpop.f32.mrf.mxu0
      %1307 = vdwg.mxu0
      %1308 = vmatpush.bf16.xpose.msra.mxu0 %v1261
      %1309 = vmatpush.bf16.xpose.msra.mxu0 %v1260
      %1310 = vmatpush.bf16.xpose.msra.mxu0 %v1259
      %1311 = vmatpush.bf16.xpose.msra.mxu0 %v1258
      %1312 = vmatpush.bf16.xpose.msra.mxu0 %v1257
      %1313 = vmatpush.bf16.xpose.msra.mxu0 %v1256
      %1314 = vmatpush.bf16.xpose.msra.mxu0 %v1255
      %1315 = vmatpush.bf16.xpose.msra.mxu0 %v1254
      %1316 = vmatmul.bf16.gmra.mxu0 %v1262
      %v1317 = vpop.f32.mrf.mxu0
      %v1318 = vadd.f32 %v1267, %v1317
      %v1319 = vpop.f32.mrf.mxu0
      %1320 = vdwg.mxu0
      %v1321 = vsub.f32 0.0, %v1279
      %v1322 = vsub.f32 0.0, %v1292
      %v1323 = vsub.f32 0.0, %v1305
      %v1324 = vsub.f32 0.0, %v1318
      %v1325 = vmul.f32 %v1321, 1.442695
      %v1326 = vpow.pop %v1325
      %v1327 = vmul.f32 %v1322, 1.442695
      %v1328 = vpow.pop %v1327
      %v1329 = vmul.f32 %v1323, 1.442695
      %v1330 = vpow.pop %v1329
      %v1331 = vmul.f32 %v1324, 1.442695
      %v1332 = vpow.pop %v1331
      %v1333 = vadd.f32 %v1326, 1.0
      %v1334 = vadd.f32 %v1328, 1.0
      %v1335 = vadd.f32 %v1330, 1.0
      %v1336 = vadd.f32 %v1332, 1.0
      %v1337 = vrcp.pop %v1333
      %v1338 = vrcp.pop %v1334
      %v1339 = vrcp.pop %v1335
      %v1340 = vrcp.pop %v1336
      %v1345 = vrot.slane %v1338, 4
      %v1346 = vrot.slane %v1340, 4
      %vm1347 = vcmask 1043456
      %v1348 = vsel %vm1347, %v1337, %v1345
      %v1349 = vsel %vm1347, %v1339, %v1346
      %1352 = vst [vmem:[%s280] sm:$0x77] %v1348
      %1353 = vst [vmem:[%s280 + $0x8] sm:$0x77] %v1349
      %s1354 = smul.u32 4, %s18
      %p1355 = scmp.lt.s32.totalorder %s1354, 7
      %s1356 = scalar_select %p1355, %s1354, 7
      %s1357 = smul.addr %s1356, 4
      %s1358 = scalar_lea.vmem %s7, %s1357
      // Predicated region
      $region49: #{mlprender_pe_forward.1} parent=47 // pred_check
        %p1359 = pneg %p188
      $region50: #{mlprender_pe_forward.1} parent=47 // pred_check_branch
        %1361 = sbr.rel (%p1359) target = $region52
      $region51: #{mlprender_pe_forward.1} parent=47 // pred_region
        %s1362 = smul.u32 4, %s18
      $region52: #{mlprender_pe_forward.1} parent=47 // pred_fallthru
        _
    $region48: #{mlprender_pe_forward.1} parent=5 // pred_fallthru
      _
    %p1363 = scmp.le.s32.totalorder 2, %s13
    // Predicated region
    $region53: #{mlprender_pe_forward.1} parent=5 // pred_check
      %p1364 = pneg %p1363
    $region54: #{mlprender_pe_forward.1} parent=5 // pred_check_branch
      %1366 = sbr.rel (%p1364) target = $region56
    $region55: #{mlprender_pe_forward.1} parent=5 // pred_region
      %s1367 = ssub.s32 %s13, 2
      // Predicated region
      $region57: #{mlprender_pe_forward.1} parent=55 // pred_check
        %p1368 = pneg %p194
      $region58: #{mlprender_pe_forward.1} parent=55 // pred_check_branch
        %1370 = sbr.rel (%p1368) target = $region60
      $region59: #{mlprender_pe_forward.1} parent=55 // pred_region
        %s1371 = smul.u32 4, %s19
        %p1372 = scmp.lt.s32.totalorder %s1371, 7
        %s1373 = scalar_select %p1372, %s1371, 7
        %s1374 = smul.addr %s1373, 4
        %s1375 = scalar_lea.vmem %s7, %s1374
      $region60: #{mlprender_pe_forward.1} parent=55 // pred_fallthru
        _
    $region56: #{mlprender_pe_forward.1} parent=5 // pred_fallthru
      _
  $region6: #{mlprender_pe_forward.1} parent=0 // loop_footer
    %s17 = sadd.s32 1, %s13
  $region7: #{mlprender_pe_forward.1} parent=0 // loop_footer_branch
    %12 = sbr.rel target = $region3
  $region8: #{mlprender_pe_forward.1} parent=0 // loop_exit
    _

</llo_original>
